<compile_context>
chip_gen: v7x
topology: tpu7x:2x2x1
jax: 0.10.0
libtpu: 0.0.40
codegen_flags: <defaults>
</compile_context>

<pallas_src>
import functools
import math

import jax
import jax.numpy as jnp
from jax.experimental import pallas as pl
from jax.experimental.pallas import tpu as pltpu


def _conv_matmul_relu_kernel(patches_ref, wt_ref, b_ref, out_ref):
    # patches_ref: (K,   TM)  bf16 im2col patches (lane-dense, TM % 128 == 0)
    # wt_ref:      (Cout, K)  bf16 weights (resident: constant index_map)
    # b_ref:       (Cout, 1)  f32 bias
    # out_ref:     (Cout, TM) f32 lane-dense output block (unmasked stores)
    acc = jnp.dot(
        wt_ref[...], patches_ref[...], preferred_element_type=jnp.float32
    )                                    # (Cout, TM), f32 accumulation on MXU
    acc = acc + b_ref[...]               # (Cout, 1) broadcasts over lanes
    out_ref[...] = jnp.maximum(acc, 0.0).astype(out_ref.dtype)


_TM_CAP = 8192  # ~620 B/lane/step double-buffered -> ~5 MiB at TM=8192


def _choose_tm(m128):
    """Pick the M tile.

    m128 is the total M already rounded up to a multiple of 128.  Returns a
    multiple of 128 (or the full, already-128-multiple extent), capped so that
    double-buffered VMEM stays far inside v7x's 32 MiB scoped budget, and
    small enough that large problems yield >= 2 parallel tiles (megacore).
    """
    if m128 <= 2 * 128:
        return m128                      # can't split below one full vreg row
    half = (m128 // 2) // 128 * 128      # >= 128 by construction
    return min(_TM_CAP, half)


@functools.partial(jax.jit, static_argnames=("stride", "padding"))
def conv2d_relu_pallas(x_nchw, weight_oihw, bias, *, stride, padding):
    """conv2d (stride, padding, no dilation) followed by ReLU.

    x_nchw:      (N, Cin, H, W)          float32
    weight_oihw: (Cout, Cin, KH, KW)     float32
    bias:        (Cout,)                 float32
    returns:     (N, Cout, H_out, W_out) float32
    """
    N, Cin, H, W = x_nchw.shape
    Cout, _, KH, KW = weight_oihw.shape
    H_out = (H + 2 * padding - KH) // stride + 1
    W_out = (W + 2 * padding - KW) // stride + 1
    Mb = H_out * W_out                 # output pixels per batch element
    M_total = N * Mb                   # batch folded into the lane axis
    K = KH * KW * Cin                  # kept unpadded (27) in HBM

    # --- glue: pad + im2col in K-major layout (K, N*Mb), done in bf16 ---
    x = x_nchw.astype(jnp.bfloat16)
    x = jnp.pad(x, ((0, 0), (0, 0), (padding, padding), (padding, padding)))

    taps = []
    for kh in range(KH):
        for kw in range(KW):
            sl = jax.lax.slice(
                x,
                (0, 0, kh, kw),
                (N, Cin,
                 kh + (H_out - 1) * stride + 1,
                 kw + (W_out - 1) * stride + 1),
                (1, 1, stride, stride),
            )  # (N, Cin, H_out, W_out)
            taps.append(sl)
    # (KH*KW, N, Cin, Ho, Wo) -> (KH*KW, Cin, N, Ho, Wo) -> (K, N*Mb)
    # K index order = (kh, kw, cin); M index order = (n, ho, wo).
    patches = jnp.stack(taps, axis=0)
    patches = jnp.transpose(patches, (0, 2, 1, 3, 4)).reshape(K, M_total)

    # Pad M up to a whole number of 128-multiple tiles (padded columns are
    # zero patches; their outputs are sliced off below).
    M128 = ((M_total + 127) // 128) * 128
    TM = _choose_tm(M128)
    n_m = (M128 + TM - 1) // TM
    M_pad = n_m * TM
    if M_pad != M_total:
        patches = jnp.pad(patches, ((0, 0), (0, M_pad - M_total)))

    # weight OIHW -> (Cout, KH, KW, Cin) -> (Cout, K), matching (kh, kw, cin)
    wt = jnp.transpose(weight_oihw, (0, 2, 3, 1)).reshape(Cout, K)
    wt = wt.astype(jnp.bfloat16)
    b = bias.reshape(Cout, 1).astype(jnp.float32)

    cost = pl.CostEstimate(
        flops=2 * Cout * K * M_pad,
        transcendentals=0,
        bytes_accessed=(K * M_pad * 2) + (Cout * K * 2)
        + (Cout * 4) + (Cout * M_pad * 4),
    )

    out = pl.pallas_call(
        _conv_matmul_relu_kernel,
        out_shape=jax.ShapeDtypeStruct((Cout, M_pad), jnp.float32),
        grid_spec=pltpu.PrefetchScalarGridSpec(
            num_scalar_prefetch=0,
            grid=(n_m,),
            in_specs=[
                pl.BlockSpec((K, TM), lambda m: (0, m)),
                pl.BlockSpec((Cout, K), lambda m: (0, 0)),    # fetched once
                pl.BlockSpec((Cout, 1), lambda m: (0, 0)),    # fetched once
            ],
            out_specs=pl.BlockSpec((Cout, TM), lambda m: (0, m)),
        ),
        compiler_params=pltpu.CompilerParams(
            dimension_semantics=("parallel",),
            vmem_limit_bytes=32 << 20,   # safe headroom, < v7x physical 64 MiB
        ),
        cost_estimate=cost,
    )(patches, wt, b)

    # (Cout, N*Mb) -> (Cout, N, Ho, Wo) -> NCHW.  For the module's real
    # batch size (N = 1) the transpose degenerates to a free reshape.
    out = out[:, :M_total].reshape(Cout, N, H_out, W_out)
    return jnp.transpose(out, (1, 0, 2, 3))


class ModelPallas:
    """Mirror of the PyTorch Model; only conv1 matters for the output."""

    def __init__(self, key):
        # Deterministic init mimicking torch.nn.Conv2d default init.
        k1, k2 = jax.random.split(key, 2)
        cin, cout, kh, kw = 3, 64, 3, 3
        fan_in = cin * kh * kw
        bound = 1.0 / math.sqrt(fan_in)
        self.conv1_w = jax.random.uniform(
            k1, (cout, cin, kh, kw), jnp.float32, -bound, bound
        )
        self.conv1_b = jax.random.uniform(k2, (cout,), jnp.float32, -bound, bound)
        # conv2 / conv3 parameters exist in the PyTorch module but feed dead code.

    def __call__(self, x1_nchw):
        # v1 = conv1(x1); v6 = relu(v1); return v6
        return conv2d_relu_pallas(
            x1_nchw, self.conv1_w, self.conv1_b, stride=2, padding=1
        )


if __name__ == "__main__":
    key = jax.random.PRNGKey(0)
    k_model, k_x = jax.random.split(key)

    model = ModelPallas(k_model)

    # Small shape consistent with the module's (N, 3, H, W) usage.
    x1 = jax.random.normal(k_x, (2, 3, 16, 16), dtype=jnp.float32)

    out = model(x1)
    out = jax.block_until_ready(out)

    # Sanity check against a plain-JAX reference using the same bf16-rounded
    # inputs (the kernel multiplies in bf16, accumulates in f32).
    xq = x1.astype(jnp.bfloat16).astype(jnp.float32)
    wq = model.conv1_w.astype(jnp.bfloat16).astype(jnp.float32)
    ref = jax.lax.conv_general_dilated(
        xq,
        wq,
        window_strides=(2, 2),
        padding=((1, 1), (1, 1)),
        dimension_numbers=("NCHW", "OIHW", "NCHW"),
        precision=jax.lax.Precision.HIGHEST,
    ) + model.conv1_b.reshape(1, -1, 1, 1)
    ref = jnp.maximum(ref, 0.0)

    assert out.shape == (2, 64, 8, 8), out.shape
    err = float(jnp.max(jnp.abs(out - ref)))
    assert jnp.allclose(out, ref, atol=1e-3, rtol=1e-3), err

    print("KERNEL_OK")
</pallas_src>

<mosaic_0001>
module attributes {stable_mosaic.version = 11 : i64} {
  func.func @_conv_matmul_relu_kernel(%arg0: i32, %arg1: memref<27x128xbf16, #tpu.memory_space<vmem>>, %arg2: memref<64x27xbf16, #tpu.memory_space<vmem>>, %arg3: memref<64x1xf32, #tpu.memory_space<vmem>>, %arg4: memref<64x128xf32, #tpu.memory_space<vmem>>) attributes {dimension_semantics = [#tpu.dimension_semantics<parallel>], iteration_bounds = array<i64: 1>, scalar_prefetch = 0 : i64, scratch_operands = 0 : i64, tpu.core_type = #tpu.core_type<tc>, window_params = [{transform_indices = @transform_0, window_bounds = array<i64: 27, 128>}, {pipeline_mode = #tpu.pipeline_mode<synchronous>, transform_indices = @transform_1, window_bounds = array<i64: 64, 27>}, {pipeline_mode = #tpu.pipeline_mode<synchronous>, transform_indices = @transform_2, window_bounds = array<i64: 64, 1>}, {transform_indices = @transform_3, window_bounds = array<i64: 64, 128>}]} {
    %c0 = arith.constant 0 : index
    %c0_0 = arith.constant 0 : index
    %0 = vector.load %arg2[%c0, %c0_0] : memref<64x27xbf16, #tpu.memory_space<vmem>>, vector<64x27xbf16>
    %c0_1 = arith.constant 0 : index
    %c0_2 = arith.constant 0 : index
    %1 = vector.load %arg1[%c0_1, %c0_2] : memref<27x128xbf16, #tpu.memory_space<vmem>>, vector<27x128xbf16>
    %cst = arith.constant dense<0.000000e+00> : vector<64x128xf32>
    %2 = tpu.matmul %0, %1, %cst {dimension_numbers = #tpu.dot_dimension_numbers<[1], [0], [0], [1], [0, 0, 1, 1], [], []>} : vector<64x27xbf16>, vector<27x128xbf16>, vector<64x128xf32> -> vector<64x128xf32>
    %c0_3 = arith.constant 0 : index
    %c0_4 = arith.constant 0 : index
    %3 = vector.load %arg3[%c0_3, %c0_4] : memref<64x1xf32, #tpu.memory_space<vmem>>, vector<64x1xf32>
    %4 = vector.broadcast %3 : vector<64x1xf32> to vector<64x128xf32>
    %5 = arith.addf %2, %4 : vector<64x128xf32>
    %cst_5 = arith.constant 0.000000e+00 : f32
    %6 = vector.broadcast %cst_5 : f32 to vector<64x128xf32>
    %7 = arith.maximumf %5, %6 : vector<64x128xf32>
    %c0_6 = arith.constant 0 : index
    %c0_7 = arith.constant 0 : index
    %8 = vector.load %arg4[%c0_6, %c0_7] : memref<64x128xf32, #tpu.memory_space<vmem>>, vector<64x128xf32>
    tpu.vector_store %arg4[%c0_6, %c0_7], %7 {strides = array<i32>} : memref<64x128xf32, #tpu.memory_space<vmem>>, vector<64x128xf32>,
    return
  }
  func.func @transform_0(%arg0: i32) -> (i32, i32) {
    %c0_i32 = arith.constant 0 : i32
    %c0_i32_0 = arith.constant 0 : i32
    return %c0_i32, %arg0 : i32, i32
  }
  func.func @transform_1(%arg0: i32) -> (i32, i32) {
    %c0_i32 = arith.constant 0 : i32
    %c0_i32_0 = arith.constant 0 : i32
    %c0_i32_1 = arith.constant 0 : i32
    return %c0_i32, %c0_i32_0 : i32, i32
  }
  func.func @transform_2(%arg0: i32) -> (i32, i32) {
    %c0_i32 = arith.constant 0 : i32
    %c0_i32_0 = arith.constant 0 : i32
    %c0_i32_1 = arith.constant 0 : i32
    return %c0_i32, %c0_i32_0 : i32, i32
  }
  func.func @transform_3(%arg0: i32) -> (i32, i32) {
    %c0_i32 = arith.constant 0 : i32
    %c0_i32_0 = arith.constant 0 : i32
    return %c0_i32, %arg0 : i32, i32
  }
}

</mosaic_0001>

<llo_original>
// kernel: conv2d_relu_pallas.1
$region0: #{conv2d_relu_pallas.1}
  #allocation0 [shape = 'u32[]', space=smem, size = 0x4, offset = 0x4, fixed_abs, tag = 'smem constant byte address 0x4 - core index']
  #allocation1 [shape = 'u32[144,128]{1,0:T(1,128)}', space=vmem, size = 0x12000, scoped, tag = 'internal scratch']
  %s0 = inlined_call_operand.vmem [shape: bf16[27,128], index: 0, kind: input, shape index: {}]
  %s1 = inlined_call_operand.vmem [shape: bf16[64,27], index: 1, kind: input, shape index: {}]
  %s2 = inlined_call_operand.vmem [shape: f32[64,1], index: 2, kind: input, shape index: {}]
  %s3 = inlined_call_operand.vmem [shape: f32[64,128], index: 3, kind: output, shape index: {}]
  %s4 = sld [smem:[#allocation0]]
  $region22: #{conv2d_relu_pallas.1} parent=0
    _
  %s6 = ssub.s32 1, %s4
  %s7 = scalar_select 0, %s6, %s4
  // Predicated region
  $region2: #{conv2d_relu_pallas.1} parent=0 // pred_check
    _
  $region3: #{conv2d_relu_pallas.1} parent=0 // pred_check_branch
    %9 = sbr.rel (0) target = $region5
  $region4: #{conv2d_relu_pallas.1} parent=0 // pred_region
    _
  $region5: #{conv2d_relu_pallas.1} parent=0 // pred_fallthru
    _
  // Predicated region
  $region6: #{conv2d_relu_pallas.1} parent=0 // pred_check
    _
  $region7: #{conv2d_relu_pallas.1} parent=0 // pred_check_branch
    %11 = sbr.rel (0) target = $region9
  $region8: #{conv2d_relu_pallas.1} parent=0 // pred_region
    _
  $region9: #{conv2d_relu_pallas.1} parent=0 // pred_fallthru
    _
  // Predicated region
  $region10: #{conv2d_relu_pallas.1} parent=0 // pred_check
    _
  $region11: #{conv2d_relu_pallas.1} parent=0 // pred_check_branch
    %13 = sbr.rel (0) target = $region13
  $region12: #{conv2d_relu_pallas.1} parent=0 // pred_region
    _
  $region13: #{conv2d_relu_pallas.1} parent=0 // pred_fallthru
    _
  %v15 = vld [vmem:[%s1] sm:$0xf]
  %v16 = vld [vmem:[%s1 + $0x4] sm:$0xf]
  %v17 = vld [vmem:[%s1 + $0x8] sm:$0xf]
  %v18 = vld [vmem:[%s1 + $0xc] sm:$0xf]
  %v19 = vld [vmem:[%s1 + $0x10] sm:$0xf]
  %v20 = vld [vmem:[%s1 + $0x14] sm:$0xf]
  %v21 = vld [vmem:[%s1 + $0x18] sm:$0xf]
  %v22 = vld [vmem:[%s1 + $0x1c] sm:$0xf]
  %v23 = vld [vmem:[%s0] sm:$0xf]
  %v24 = vld [vmem:[%s0 + $0x4] sm:$0xf]
  %v25 = vld [vmem:[%s0 + $0x8] sm:$0xf]
  %v26 = vld [vmem:[%s0 + $0xc] sm:$0x3]
  %v27 = vld [vmem:[%s2] sm:$0xff]
  %v28 = vld [vmem:[%s2 + $0x8] sm:$0xff]
  %v29 = vld [vmem:[%s2 + $0x10] sm:$0xff]
  %v30 = vld [vmem:[%s2 + $0x18] sm:$0xff]
  %v31 = vld [vmem:[%s2 + $0x20] sm:$0xff]
  %v32 = vld [vmem:[%s2 + $0x28] sm:$0xff]
  %v33 = vld [vmem:[%s2 + $0x30] sm:$0xff]
  %v34 = vld [vmem:[%s2 + $0x38] sm:$0xff]
  %36 = vset.pattern.permute.xlu0 0
  %37 = vperm.xlu0 %36, %v27
  %v38 = vpop.permute.xlu0 %37
  %41 = vset.pattern.permute.xlu0 0
  %42 = vperm.xlu0 %41, %v28
  %v43 = vpop.permute.xlu0 %42
  %46 = vset.pattern.permute.xlu0 0
  %47 = vperm.xlu0 %46, %v29
  %v48 = vpop.permute.xlu0 %47
  %51 = vset.pattern.permute.xlu0 0
  %52 = vperm.xlu0 %51, %v30
  %v53 = vpop.permute.xlu0 %52
  %56 = vset.pattern.permute.xlu0 0
  %57 = vperm.xlu0 %56, %v31
  %v58 = vpop.permute.xlu0 %57
  %61 = vset.pattern.permute.xlu0 0
  %62 = vperm.xlu0 %61, %v32
  %v63 = vpop.permute.xlu0 %62
  %66 = vset.pattern.permute.xlu0 0
  %67 = vperm.xlu0 %66, %v33
  %v68 = vpop.permute.xlu0 %67
  %71 = vset.pattern.permute.xlu0 0
  %72 = vperm.xlu0 %71, %v34
  %v73 = vpop.permute.xlu0 %72
  %v83 = vunpack.c.l.b16 %v15
  %v84 = vunpack.c.l.b16 %v16
  %v85 = vunpack.c.l.b16 %v17
  %v86 = vunpack.c.l.b16 %v18
  %v87 = vunpack.c.l.b16 %v19
  %v88 = vunpack.c.l.b16 %v20
  %v89 = vunpack.c.l.b16 %v21
  %v90 = vunpack.c.l.b16 %v22
  %v91 = vpack.c.b16 %v84, %v83
  %v92 = vpack.c.b16 %v86, %v85
  %v93 = vpack.c.b16 %v88, %v87
  %v94 = vpack.c.b16 %v90, %v89
  %v99 = vunpack.c.l.b16 %v23
  %v100 = vunpack.c.l.b16 %v24
  %v101 = vunpack.c.l.b16 %v25
  %v102 = vunpack.c.l.b16 %v26
  %v103 = vpack.c.b16 %v100, %v99
  %v104 = vpack.c.b16 %v102, %v101
  %vm106 = vcmask 220160
  %v108 = vsel %vm106, %v91, 0
  %v111 = vsel %vm106, %v92, 0
  %v114 = vsel %vm106, %v93, 0
  %v117 = vsel %vm106, %v94, 0
  %vm119 = vcmask 1044480
  %vm120 = vcmask 1045504
  %v121 = vsel %vm119, 4294967295, 65535
  %v122 = vsel %vm120, %v121, 0
  %v124 = vand.u32 %v104, %v122
  %126 = vmatprep.subr.bf16.mxu0 0
  %127 = vmatpush1.bf16.msra.mxu0 %v103
  %128 = vmatprep.subr.bf16.mxu0 0
  %129 = vmatpush1.bf16.msra.mxu0 %v124
  %130 = vmatprep.subr.bf16.mxu0 0
  %131 = vmatpush1.bf16.msra.mxu0 0
  %132 = vmatprep.subr.bf16.mxu0 0
  %133 = vmatpush1.bf16.msra.mxu0 0
  %134 = vmatprep.subr.bf16.mxu0 0
  %135 = vmatpush1.bf16.msra.mxu0 0
  %136 = vmatprep.subr.bf16.mxu0 0
  %137 = vmatpush1.bf16.msra.mxu0 0
  %138 = vmatprep.subr.bf16.mxu0 0
  %139 = vmatpush1.bf16.msra.mxu0 0
  %140 = vmatprep.subr.bf16.mxu0 0
  %141 = vmatpush1.bf16.msra.mxu0 0
  %142 = vmatprep.subr.bf16.mxu0 0
  %143 = vmatpush1.bf16.msra.mxu0 0
  %144 = vmatprep.subr.bf16.mxu0 0
  %145 = vmatpush1.bf16.msra.mxu0 0
  %146 = vmatprep.subr.bf16.mxu0 0
  %147 = vmatpush1.bf16.msra.mxu0 0
  %148 = vmatprep.subr.bf16.mxu0 0
  %149 = vmatpush1.bf16.msra.mxu0 0
  %150 = vmatprep.subr.bf16.mxu0 0
  %151 = vmatpush1.bf16.msra.mxu0 0
  %152 = vmatprep.subr.bf16.mxu0 0
  %153 = vmatpush1.bf16.msra.mxu0 0
  %154 = vmatprep.subr.bf16.mxu0 0
  %155 = vmatpush1.bf16.msra.mxu0 0
  %156 = vmatprep.subr.bf16.mxu0 0
  %157 = vmatpush1.bf16.msra.mxu0 0
  %158 = vmatprep.mubr.bf16.mxu0 0
  %159 = vmatmul.mubr.bf16.gmra.mrb[0].mxu0 %v108
  %v160 = vpop.f32.mrb[0].mxu0
  %v161 = vadd.f32 %v38, %v160
  %v162 = vpop.f32.mrb[0].mxu0
  %v163 = vpop.f32.mrb[0].mxu0
  %v164 = vadd.f32 %v43, %v163
  %v165 = vpop.f32.mrb[0].mxu0
  %166 = vmatprep.mubr.bf16.mxu0 0
  %167 = vmatmul.mubr.bf16.gmra.mrb[0].mxu0 %v111
  %v168 = vpop.f32.mrb[0].mxu0
  %v169 = vadd.f32 %v48, %v168
  %v170 = vpop.f32.mrb[0].mxu0
  %v171 = vpop.f32.mrb[0].mxu0
  %v172 = vadd.f32 %v53, %v171
  %v173 = vpop.f32.mrb[0].mxu0
  %174 = vmatprep.mubr.bf16.mxu0 0
  %175 = vmatmul.mubr.bf16.gmra.mrb[0].mxu0 %v114
  %v176 = vpop.f32.mrb[0].mxu0
  %v177 = vadd.f32 %v58, %v176
  %v178 = vpop.f32.mrb[0].mxu0
  %v179 = vpop.f32.mrb[0].mxu0
  %v180 = vadd.f32 %v63, %v179
  %v181 = vpop.f32.mrb[0].mxu0
  %182 = vmatprep.mubr.bf16.mxu0 0
  %183 = vmatmul.mubr.bf16.gmra.mrb[0].mxu0 %v117
  %v184 = vpop.f32.mrb[0].mxu0
  %v185 = vadd.f32 %v68, %v184
  %v186 = vpop.f32.mrb[0].mxu0
  %v187 = vpop.f32.mrb[0].mxu0
  %v188 = vadd.f32 %v73, %v187
  %v189 = vpop.f32.mrb[0].mxu0
  %190 = vdwg.mxu0
  %v191 = vmax.f32 %v161, 0.0
  %v192 = vmax.f32 %v164, 0.0
  %v193 = vmax.f32 %v169, 0.0
  %v194 = vmax.f32 %v172, 0.0
  %v195 = vmax.f32 %v177, 0.0
  %v196 = vmax.f32 %v180, 0.0
  %v197 = vmax.f32 %v185, 0.0
  %v198 = vmax.f32 %v188, 0.0
  %199 = vst [vmem:[%s3] sm:$0xff] %v191
  %200 = vst [vmem:[%s3 + $0x8] sm:$0xff] %v192
  %201 = vst [vmem:[%s3 + $0x10] sm:$0xff] %v193
  %202 = vst [vmem:[%s3 + $0x18] sm:$0xff] %v194
  %203 = vst [vmem:[%s3 + $0x20] sm:$0xff] %v195
  %204 = vst [vmem:[%s3 + $0x28] sm:$0xff] %v196
  %205 = vst [vmem:[%s3 + $0x30] sm:$0xff] %v197
  %206 = vst [vmem:[%s3 + $0x38] sm:$0xff] %v198
  // Predicated region
  $region14: #{conv2d_relu_pallas.1} parent=0 // pred_check
    _
  $region15: #{conv2d_relu_pallas.1} parent=0 // pred_check_branch
    %208 = sbr.rel (0) target = $region17
  $region16: #{conv2d_relu_pallas.1} parent=0 // pred_region
    _
  $region17: #{conv2d_relu_pallas.1} parent=0 // pred_fallthru
    _
  // Predicated region
  $region18: #{conv2d_relu_pallas.1} parent=0 // pred_check
    _
  $region19: #{conv2d_relu_pallas.1} parent=0 // pred_check_branch
    %210 = sbr.rel (0) target = $region21
  $region20: #{conv2d_relu_pallas.1} parent=0 // pred_region
    _
  $region21: #{conv2d_relu_pallas.1} parent=0 // pred_fallthru
    _

</llo_original>
